<compile_context>
chip_gen: v7x
topology: tpu7x:2x2x1
jax: 0.10.0
libtpu: 0.0.40
codegen_flags: <defaults>
</compile_context>

<pallas_src>
import functools

import jax
import jax.numpy as jnp
from jax.experimental import pallas as pl
from jax.experimental.pallas import tpu as pltpu


def _attention_kernel(x_ref, w_ref, b_ref, o_ref, *, d: int, n: int, nb: int):
    """One slab: x_ref (D, nb*N) channels-first, w_ref (3D, D), b_ref (3D, 1)."""
    x = x_ref[...]                                                    # (D, Ns)
    w = w_ref[...]                                                    # (3D, D)
    b = b_ref[...]                                                    # (3D, 1)

    # Fused Q/K/V projection over the whole slab: one MXU matmul, f32 accumulate.
    qkv = jnp.dot(w, x, preferred_element_type=jnp.float32)          # (3D, Ns)

    # q bias changes the attention weights -> keep it.
    q_t = qkv[0 * d:1 * d, :] + b[0 * d:1 * d, :]                    # (D, Ns)
    # k bias adds a per-query constant to every logit -> cancels in the softmax
    # over keys; skip the add (fewer VALU ops on the critical path).
    k_t = qkv[1 * d:2 * d, :]                                        # (D, Ns)
    v_t = qkv[2 * d:3 * d, :] + b[2 * d:3 * d, :]                    # (D, Ns)

    # Statically-unrolled per-batch attention: one basic block, full scheduler
    # visibility.  All slices are tile-aligned (rows % 8, cols % 128) -> no
    # relayout copies.
    for i in range(nb):
        cols = slice(i * n, (i + 1) * n)
        q_b = q_t[:, cols]                                           # (D, N)
        k_b = k_t[:, cols]                                           # (D, N)
        v_b = v_t[:, cols]                                           # (D, N)

        # Transposed logits: logits_t[k, q] = k_k . q_q.  NN MXU contraction;
        # only relayout is this tiny (D, N) -> (N, D) transpose of k.
        k_nd = k_b.T                                                 # (N, D)
        logits_t = jnp.dot(k_nd, q_b,
                           preferred_element_type=jnp.float32)       # (Nk, Nq)

        # Numerically-stable softmax over keys == axis 0 in this orientation
        # (cross-sublane reductions: mostly elementwise VPU adds).
        m = jnp.max(logits_t, axis=0, keepdims=True)                 # (1, Nq)
        p = jnp.exp(logits_t - m)                                    # (Nk, Nq)
        denom = jnp.sum(p, axis=0, keepdims=True)                    # (1, Nq)

        # Deferred normalization: un-normalized p goes straight to the MXU
        # (NN contraction, result already channels-first), then only the small
        # (D, N) output is rescaled -> EUP reciprocal overlaps MXU work.
        out_u = jnp.dot(v_b, p, preferred_element_type=jnp.float32)  # (D, Nq)
        out_b = out_u * pl.reciprocal(denom, approx=True)            # (D, Nq)

        o_ref[:, cols] = out_b.astype(o_ref.dtype)


def attention_layer_pallas(x, w_qkv, b_qkv, *, num_slabs: int = 1):
    """x: (B, D, N) channels-first.  w_qkv: (3D, D) = [Wq; Wk; Wv].  b_qkv: (3D, 1).

    num_slabs=1: single kernel invocation (best on single-TC v5e/v6e).
    num_slabs=2: two half-batch slabs, one per v7x TensorCore ("parallel" axis).
    """
    B, D, N = x.shape
    assert w_qkv.shape == (3 * D, D) and b_qkv.shape == (3 * D, 1)
    assert D % 8 == 0, "in_dim must be a multiple of 8 (f32 sublane tile)"
    assert N % 128 == 0, "num_points must be a multiple of 128 (lane tile)"
    assert B % num_slabs == 0
    nb = B // num_slabs                  # batches per slab
    ns = nb * N                          # slab width (lanes)

    # Layout plumbing (tiny XLA ops outside the kernel): present x as a single
    # lane-dense (D, B*N) slab; undo on the way out.
    x_slab = jnp.transpose(x, (1, 0, 2)).reshape(D, B * N)

    kernel = functools.partial(_attention_kernel, d=D, n=N, nb=nb)
    out_slab = pl.pallas_call(
        kernel,
        out_shape=jax.ShapeDtypeStruct((D, B * N), x.dtype),
        grid=(num_slabs,),
        in_specs=[
            pl.BlockSpec((D, ns), lambda s: (0, s)),        # per-slab x columns
            pl.BlockSpec((3 * D, D), lambda s: (0, 0)),     # replicated fused weight
            pl.BlockSpec((3 * D, 1), lambda s: (0, 0)),     # replicated fused bias
        ],
        out_specs=pl.BlockSpec((D, ns), lambda s: (0, s)),
        compiler_params=pltpu.CompilerParams(
            dimension_semantics=("parallel",)),             # shards slabs across TCs
    )(x_slab, w_qkv, b_qkv)

    return jnp.transpose(out_slab.reshape(D, B, N), (1, 0, 2))


def attention_layer_reference(x, wq, bq, wk, bk, wv, bv):
    """Pure-JAX reference matching the PyTorch module exactly."""
    xt = jnp.transpose(x, (0, 2, 1))                         # (B, N, D)
    q = xt @ wq.T + bq
    k = xt @ wk.T + bk
    v = xt @ wv.T + bv
    logits = jnp.einsum('bnd,bmd->bnm', q, k)
    attn = jax.nn.softmax(logits, axis=-1)
    out = jnp.einsum('bnm,bmd->bnd', attn, v)
    return jnp.transpose(out, (0, 2, 1))                     # (B, D, N)


if __name__ == "__main__":
    key = jax.random.PRNGKey(0)
    B, D, N = 2, 16, 128              # (batch, in_dim, num_points)

    kx, kq, kk, kv, kbq, kbk, kbv = jax.random.split(key, 7)
    x = jax.random.normal(kx, (B, D, N), jnp.float32)

    bound = 1.0 / (D ** 0.5)          # nn.Linear default init range
    wq = jax.random.uniform(kq, (D, D), jnp.float32, -bound, bound)
    wk = jax.random.uniform(kk, (D, D), jnp.float32, -bound, bound)
    wv = jax.random.uniform(kv, (D, D), jnp.float32, -bound, bound)
    bq = jax.random.uniform(kbq, (D,), jnp.float32, -bound, bound)
    bk = jax.random.uniform(kbk, (D,), jnp.float32, -bound, bound)
    bv = jax.random.uniform(kbv, (D,), jnp.float32, -bound, bound)

    # Pack the three Linears into one fused weight / bias operand.
    w_qkv = jnp.concatenate([wq, wk, wv], axis=0)            # (3D, D)
    b_qkv = jnp.concatenate([bq, bk, bv], axis=0)[:, None]   # (3D, 1)

    ref = attention_layer_reference(x, wq, bq, wk, bk, wv, bv)

    # num_slabs=1: fully-fused single invocation (v5e/v6e target)
    # num_slabs=2: one half-batch slab per TensorCore (v7x target)
    for num_slabs in (1, 2):
        fn = jax.jit(functools.partial(attention_layer_pallas,
                                       num_slabs=num_slabs))
        out = jax.block_until_ready(fn(x, w_qkv, b_qkv))
        assert out.shape == (B, D, N)
        assert bool(jnp.all(jnp.isfinite(out)))
        max_err = float(jnp.max(jnp.abs(out - ref)))
        # approx-reciprocal on the deferred softmax normalization -> small drift
        assert max_err < 1e-2, (
            f"num_slabs={num_slabs}: max abs error vs reference: {max_err}")

    print("KERNEL_OK")
</pallas_src>

<mosaic_0001>
module attributes {stable_mosaic.version = 11 : i64} {
  func.func @_attention_kernel(%arg0: i32, %arg1: memref<16x256xf32, #tpu.memory_space<vmem>>, %arg2: memref<48x16xf32, #tpu.memory_space<vmem>>, %arg3: memref<48x1xf32, #tpu.memory_space<vmem>>, %arg4: memref<16x256xf32, #tpu.memory_space<vmem>>) attributes {dimension_semantics = [#tpu.dimension_semantics<parallel>], iteration_bounds = array<i64: 1>, scalar_prefetch = 0 : i64, scratch_operands = 0 : i64, tpu.core_type = #tpu.core_type<tc>, window_params = [{transform_indices = @transform_0, window_bounds = array<i64: 16, 256>}, {pipeline_mode = #tpu.pipeline_mode<synchronous>, transform_indices = @transform_1, window_bounds = array<i64: 48, 16>}, {pipeline_mode = #tpu.pipeline_mode<synchronous>, transform_indices = @transform_2, window_bounds = array<i64: 48, 1>}, {transform_indices = @transform_3, window_bounds = array<i64: 16, 256>}]} {
    %c0 = arith.constant 0 : index
    %c0_0 = arith.constant 0 : index
    %0 = vector.load %arg1[%c0, %c0_0] : memref<16x256xf32, #tpu.memory_space<vmem>>, vector<16x256xf32>
    %c0_1 = arith.constant 0 : index
    %c0_2 = arith.constant 0 : index
    %1 = vector.load %arg2[%c0_1, %c0_2] : memref<48x16xf32, #tpu.memory_space<vmem>>, vector<48x16xf32>
    %c0_3 = arith.constant 0 : index
    %c0_4 = arith.constant 0 : index
    %2 = vector.load %arg3[%c0_3, %c0_4] : memref<48x1xf32, #tpu.memory_space<vmem>>, vector<48x1xf32>
    %cst = arith.constant dense<0.000000e+00> : vector<48x256xf32>
    %3 = tpu.matmul %1, %0, %cst {dimension_numbers = #tpu.dot_dimension_numbers<[1], [0], [0], [1], [0, 0, 1, 1], [], []>} : vector<48x16xf32>, vector<16x256xf32>, vector<48x256xf32> -> vector<48x256xf32>
    %4 = vector.extract_strided_slice %3 {offsets = [0, 0], sizes = [16, 256], strides = [1, 1]} : vector<48x256xf32> to vector<16x256xf32>
    %5 = vector.extract_strided_slice %2 {offsets = [0, 0], sizes = [16, 1], strides = [1, 1]} : vector<48x1xf32> to vector<16x1xf32>
    %6 = vector.broadcast %5 : vector<16x1xf32> to vector<16x256xf32>
    %7 = arith.addf %4, %6 : vector<16x256xf32>
    %8 = vector.extract_strided_slice %3 {offsets = [16, 0], sizes = [16, 256], strides = [1, 1]} : vector<48x256xf32> to vector<16x256xf32>
    %9 = vector.extract_strided_slice %3 {offsets = [32, 0], sizes = [16, 256], strides = [1, 1]} : vector<48x256xf32> to vector<16x256xf32>
    %10 = vector.extract_strided_slice %2 {offsets = [32, 0], sizes = [16, 1], strides = [1, 1]} : vector<48x1xf32> to vector<16x1xf32>
    %11 = vector.broadcast %10 : vector<16x1xf32> to vector<16x256xf32>
    %12 = arith.addf %9, %11 : vector<16x256xf32>
    %13 = vector.extract_strided_slice %7 {offsets = [0, 0], sizes = [16, 128], strides = [1, 1]} : vector<16x256xf32> to vector<16x128xf32>
    %14 = vector.extract_strided_slice %8 {offsets = [0, 0], sizes = [16, 128], strides = [1, 1]} : vector<16x256xf32> to vector<16x128xf32>
    %15 = vector.extract_strided_slice %12 {offsets = [0, 0], sizes = [16, 128], strides = [1, 1]} : vector<16x256xf32> to vector<16x128xf32>
    %16 = tpu.transpose %14, [1, 0] : vector<16x128xf32> -> vector<128x16xf32>
    %cst_5 = arith.constant dense<0.000000e+00> : vector<128x128xf32>
    %17 = tpu.matmul %16, %13, %cst_5 {dimension_numbers = #tpu.dot_dimension_numbers<[1], [0], [0], [1], [0, 0, 1, 1], [], []>} : vector<128x16xf32>, vector<16x128xf32>, vector<128x128xf32> -> vector<128x128xf32>
    %cst_6 = arith.constant dense<0xFF800000> : vector<128xf32>
    %18 = vector.multi_reduction <maximumf>, %17, %cst_6 [0] : vector<128x128xf32> to vector<128xf32>
    %19 = vector.shape_cast %18 : vector<128xf32> to vector<1x128xf32>
    %20 = vector.broadcast %19 : vector<1x128xf32> to vector<128x128xf32>
    %21 = arith.subf %17, %20 : vector<128x128xf32>
    %22 = math.exp %21 : vector<128x128xf32>
    %cst_7 = arith.constant dense<0.000000e+00> : vector<128xf32>
    %23 = vector.multi_reduction <add>, %22, %cst_7 [0] : vector<128x128xf32> to vector<128xf32>
    %24 = vector.shape_cast %23 : vector<128xf32> to vector<1x128xf32>
    %cst_8 = arith.constant dense<0.000000e+00> : vector<16x128xf32>
    %25 = tpu.matmul %15, %22, %cst_8 {dimension_numbers = #tpu.dot_dimension_numbers<[1], [0], [0], [1], [0, 0, 1, 1], [], []>} : vector<16x128xf32>, vector<128x128xf32>, vector<16x128xf32> -> vector<16x128xf32>
    %26 = tpu.reciprocal %24 {approx = true} : vector<1x128xf32> -> vector<1x128xf32>
    %27 = vector.broadcast %26 : vector<1x128xf32> to vector<16x128xf32>
    %28 = arith.mulf %25, %27 : vector<16x128xf32>
    %c0_9 = arith.constant 0 : index
    %c0_10 = arith.constant 0 : index
    %29 = vector.load %arg4[%c0_9, %c0_10] : memref<16x256xf32, #tpu.memory_space<vmem>>, vector<16x128xf32>
    tpu.vector_store %arg4[%c0_9, %c0_10], %28 {strides = array<i32>} : memref<16x256xf32, #tpu.memory_space<vmem>>, vector<16x128xf32>,
    %30 = vector.extract_strided_slice %7 {offsets = [0, 128], sizes = [16, 128], strides = [1, 1]} : vector<16x256xf32> to vector<16x128xf32>
    %31 = vector.extract_strided_slice %8 {offsets = [0, 128], sizes = [16, 128], strides = [1, 1]} : vector<16x256xf32> to vector<16x128xf32>
    %32 = vector.extract_strided_slice %12 {offsets = [0, 128], sizes = [16, 128], strides = [1, 1]} : vector<16x256xf32> to vector<16x128xf32>
    %33 = tpu.transpose %31, [1, 0] : vector<16x128xf32> -> vector<128x16xf32>
    %cst_11 = arith.constant dense<0.000000e+00> : vector<128x128xf32>
    %34 = tpu.matmul %33, %30, %cst_11 {dimension_numbers = #tpu.dot_dimension_numbers<[1], [0], [0], [1], [0, 0, 1, 1], [], []>} : vector<128x16xf32>, vector<16x128xf32>, vector<128x128xf32> -> vector<128x128xf32>
    %cst_12 = arith.constant dense<0xFF800000> : vector<128xf32>
    %35 = vector.multi_reduction <maximumf>, %34, %cst_12 [0] : vector<128x128xf32> to vector<128xf32>
    %36 = vector.shape_cast %35 : vector<128xf32> to vector<1x128xf32>
    %37 = vector.broadcast %36 : vector<1x128xf32> to vector<128x128xf32>
    %38 = arith.subf %34, %37 : vector<128x128xf32>
    %39 = math.exp %38 : vector<128x128xf32>
    %cst_13 = arith.constant dense<0.000000e+00> : vector<128xf32>
    %40 = vector.multi_reduction <add>, %39, %cst_13 [0] : vector<128x128xf32> to vector<128xf32>
    %41 = vector.shape_cast %40 : vector<128xf32> to vector<1x128xf32>
    %cst_14 = arith.constant dense<0.000000e+00> : vector<16x128xf32>
    %42 = tpu.matmul %32, %39, %cst_14 {dimension_numbers = #tpu.dot_dimension_numbers<[1], [0], [0], [1], [0, 0, 1, 1], [], []>} : vector<16x128xf32>, vector<128x128xf32>, vector<16x128xf32> -> vector<16x128xf32>
    %43 = tpu.reciprocal %41 {approx = true} : vector<1x128xf32> -> vector<1x128xf32>
    %44 = vector.broadcast %43 : vector<1x128xf32> to vector<16x128xf32>
    %45 = arith.mulf %42, %44 : vector<16x128xf32>
    %c0_15 = arith.constant 0 : index
    %c128 = arith.constant 128 : index
    %46 = vector.load %arg4[%c0_15, %c128] : memref<16x256xf32, #tpu.memory_space<vmem>>, vector<16x128xf32>
    tpu.vector_store %arg4[%c0_15, %c128], %45 {strides = array<i32>} : memref<16x256xf32, #tpu.memory_space<vmem>>, vector<16x128xf32>,
    return
  }
  func.func @transform_0(%arg0: i32) -> (i32, i32) {
    %c0_i32 = arith.constant 0 : i32
    %c0_i32_0 = arith.constant 0 : i32
    return %c0_i32, %arg0 : i32, i32
  }
  func.func @transform_1(%arg0: i32) -> (i32, i32) {
    %c0_i32 = arith.constant 0 : i32
    %c0_i32_0 = arith.constant 0 : i32
    %c0_i32_1 = arith.constant 0 : i32
    return %c0_i32, %c0_i32_0 : i32, i32
  }
  func.func @transform_2(%arg0: i32) -> (i32, i32) {
    %c0_i32 = arith.constant 0 : i32
    %c0_i32_0 = arith.constant 0 : i32
    %c0_i32_1 = arith.constant 0 : i32
    return %c0_i32, %c0_i32_0 : i32, i32
  }
  func.func @transform_3(%arg0: i32) -> (i32, i32) {
    %c0_i32 = arith.constant 0 : i32
    %c0_i32_0 = arith.constant 0 : i32
    return %c0_i32, %arg0 : i32, i32
  }
}

</mosaic_0001>

<llo_original>
// kernel: attention_layer_pallas.1
$region0: #{attention_layer_pallas.1}
  #allocation0 [shape = 'u32[]', space=smem, size = 0x4, offset = 0x4, fixed_abs, tag = 'smem constant byte address 0x4 - core index']
  #allocation1 [shape = 'u32[144,128]{1,0:T(1,128)}', space=vmem, size = 0x12000, scoped, tag = 'internal scratch']
  %s0 = inlined_call_operand.vmem [shape: f32[16,256], index: 0, kind: input, shape index: {}]
  %s1 = inlined_call_operand.vmem [shape: f32[48,16], index: 1, kind: input, shape index: {}]
  %s2 = inlined_call_operand.vmem [shape: f32[48,1], index: 2, kind: input, shape index: {}]
  %s3 = inlined_call_operand.vmem [shape: f32[16,256], index: 3, kind: output, shape index: {}]
  %s4 = sld [smem:[#allocation0]]
  $region22: #{attention_layer_pallas.1} parent=0
    _
  %s6 = ssub.s32 1, %s4
  %s7 = scalar_select 0, %s6, %s4
  // Predicated region
  $region2: #{attention_layer_pallas.1} parent=0 // pred_check
    _
  $region3: #{attention_layer_pallas.1} parent=0 // pred_check_branch
    %9 = sbr.rel (0) target = $region5
  $region4: #{attention_layer_pallas.1} parent=0 // pred_region
    _
  $region5: #{attention_layer_pallas.1} parent=0 // pred_fallthru
    _
  // Predicated region
  $region6: #{attention_layer_pallas.1} parent=0 // pred_check
    _
  $region7: #{attention_layer_pallas.1} parent=0 // pred_check_branch
    %11 = sbr.rel (0) target = $region9
  $region8: #{attention_layer_pallas.1} parent=0 // pred_region
    _
  $region9: #{attention_layer_pallas.1} parent=0 // pred_fallthru
    _
  // Predicated region
  $region10: #{attention_layer_pallas.1} parent=0 // pred_check
    _
  $region11: #{attention_layer_pallas.1} parent=0 // pred_check_branch
    %13 = sbr.rel (0) target = $region13
  $region12: #{attention_layer_pallas.1} parent=0 // pred_region
    _
  $region13: #{attention_layer_pallas.1} parent=0 // pred_fallthru
    _
  %v14 = vld [vmem:[%s0] sm:$0xff]
  %v15 = vld [vmem:[%s0 + $0x8] sm:$0xff]
  %v16 = vld [vmem:[%s0 + $0x10] sm:$0xff]
  %v17 = vld [vmem:[%s0 + $0x18] sm:$0xff]
  %v18 = vld [vmem:[%s1] sm:$0xff]
  %v19 = vld [vmem:[%s1 + $0x8] sm:$0xff]
  %v20 = vld [vmem:[%s1 + $0x10] sm:$0xff]
  %v21 = vld [vmem:[%s1 + $0x18] sm:$0xff]
  %v22 = vld [vmem:[%s1 + $0x20] sm:$0xff]
  %v23 = vld [vmem:[%s1 + $0x28] sm:$0xff]
  %v24 = vld [vmem:[%s2] sm:$0xff]
  %v25 = vld [vmem:[%s2 + $0x8] sm:$0xff]
  %v26 = vld [vmem:[%s2 + $0x20] sm:$0xff]
  %v27 = vld [vmem:[%s2 + $0x28] sm:$0xff]
  %vm28 = vcmask 130048
  %v30 = vsel %vm28, %v18, 0
  %v33 = vsel %vm28, %v19, 0
  %v36 = vsel %vm28, %v20, 0
  %v39 = vsel %vm28, %v21, 0
  %v42 = vsel %vm28, %v22, 0
  %v45 = vsel %vm28, %v23, 0
  %47 = vmatprep.subr.mxu0 %v15
  %48 = vmatpush1.msra.mxu0 %v14
  %49 = vmatprep.subr.mxu0 %v17
  %50 = vmatpush1.msra.mxu0 %v16
  %51 = vmatprep.subr.mxu0 0.0
  %52 = vmatpush1.msra.mxu0 0.0
  %53 = vmatprep.subr.mxu0 0.0
  %54 = vmatpush1.msra.mxu0 0.0
  %55 = vmatprep.subr.mxu0 0.0
  %56 = vmatpush1.msra.mxu0 0.0
  %57 = vmatprep.subr.mxu0 0.0
  %58 = vmatpush1.msra.mxu0 0.0
  %59 = vmatprep.subr.mxu0 0.0
  %60 = vmatpush1.msra.mxu0 0.0
  %61 = vmatprep.subr.mxu0 0.0
  %62 = vmatpush1.msra.mxu0 0.0
  %63 = vmatprep.subr.mxu0 0.0
  %64 = vmatpush1.msra.mxu0 0.0
  %65 = vmatprep.subr.mxu0 0.0
  %66 = vmatpush1.msra.mxu0 0.0
  %67 = vmatprep.subr.mxu0 0.0
  %68 = vmatpush1.msra.mxu0 0.0
  %69 = vmatprep.subr.mxu0 0.0
  %70 = vmatpush1.msra.mxu0 0.0
  %71 = vmatprep.subr.mxu0 0.0
  %72 = vmatpush1.msra.mxu0 0.0
  %73 = vmatprep.subr.mxu0 0.0
  %74 = vmatpush1.msra.mxu0 0.0
  %75 = vmatprep.subr.mxu0 0.0
  %76 = vmatpush1.msra.mxu0 0.0
  %77 = vmatprep.subr.mxu0 0.0
  %78 = vmatpush1.msra.mxu0 0.0
  %79 = vmatprep.subr.mxu0 0.0
  %80 = vmatpush1.msra.mxu0 0.0
  %81 = vmatprep.subr.mxu0 0.0
  %82 = vmatpush1.msra.mxu0 0.0
  %83 = vmatprep.subr.mxu0 0.0
  %84 = vmatpush1.msra.mxu0 0.0
  %85 = vmatprep.subr.mxu0 0.0
  %86 = vmatpush1.msra.mxu0 0.0
  %87 = vmatprep.subr.mxu0 0.0
  %88 = vmatpush1.msra.mxu0 0.0
  %89 = vmatprep.subr.mxu0 0.0
  %90 = vmatpush1.msra.mxu0 0.0
  %91 = vmatprep.subr.mxu0 0.0
  %92 = vmatpush1.msra.mxu0 0.0
  %93 = vmatprep.subr.mxu0 0.0
  %94 = vmatpush1.msra.mxu0 0.0
  %95 = vmatprep.subr.mxu0 0.0
  %96 = vmatpush1.msra.mxu0 0.0
  %97 = vmatprep.subr.mxu0 0.0
  %98 = vmatpush1.msra.mxu0 0.0
  %99 = vmatprep.subr.mxu0 0.0
  %100 = vmatpush1.msra.mxu0 0.0
  %101 = vmatprep.subr.mxu0 0.0
  %102 = vmatpush1.msra.mxu0 0.0
  %103 = vmatprep.subr.mxu0 0.0
  %104 = vmatpush1.msra.mxu0 0.0
  %105 = vmatprep.subr.mxu0 0.0
  %106 = vmatpush1.msra.mxu0 0.0
  %107 = vmatprep.subr.mxu0 0.0
  %108 = vmatpush1.msra.mxu0 0.0
  %109 = vmatprep.subr.mxu0 0.0
  %110 = vmatpush1.msra.mxu0 0.0
  %111 = vmatprep.mubr.f32.mxu0 0.0
  %112 = vmatmul.mubr.f32.gmra.mrb[0].mxu0 %v30
  %v113 = vpop.f32.mrb[0].mxu0
  %v114 = vadd.f32 0.0, %v113
  %v115 = vpop.f32.mrb[0].mxu0
  %v116 = vadd.f32 0.0, %v115
  %117 = vmatprep.mubr.f32.mxu0 0.0
  %118 = vmatmul.mubr.f32.gmra.mrb[0].mxu0 %v33
  %v119 = vpop.f32.mrb[0].mxu0
  %v120 = vadd.f32 0.0, %v119
  %v121 = vpop.f32.mrb[0].mxu0
  %v122 = vadd.f32 0.0, %v121
  %123 = vmatprep.mubr.f32.mxu0 0.0
  %124 = vmatmul.mubr.f32.gmra.mrb[0].mxu0 %v36
  %v125 = vpop.f32.mrb[0].mxu0
  %v126 = vadd.f32 0.0, %v125
  %v127 = vpop.f32.mrb[0].mxu0
  %v128 = vadd.f32 0.0, %v127
  %129 = vmatprep.mubr.f32.mxu0 0.0
  %130 = vmatmul.mubr.f32.gmra.mrb[0].mxu0 %v39
  %v131 = vpop.f32.mrb[0].mxu0
  %v132 = vadd.f32 0.0, %v131
  %v133 = vpop.f32.mrb[0].mxu0
  %v134 = vadd.f32 0.0, %v133
  %135 = vmatprep.mubr.f32.mxu0 0.0
  %136 = vmatmul.mubr.f32.gmra.mrb[0].mxu0 %v42
  %v137 = vpop.f32.mrb[0].mxu0
  %v138 = vadd.f32 0.0, %v137
  %v139 = vpop.f32.mrb[0].mxu0
  %v140 = vadd.f32 0.0, %v139
  %141 = vmatprep.mubr.f32.mxu0 0.0
  %142 = vmatmul.mubr.f32.gmra.mrb[0].mxu0 %v45
  %v143 = vpop.f32.mrb[0].mxu0
  %v144 = vadd.f32 0.0, %v143
  %v145 = vpop.f32.mrb[0].mxu0
  %v146 = vadd.f32 0.0, %v145
  %147 = vdwg.mxu0
  %149 = vset.pattern.permute.xlu0 0
  %150 = vperm.xlu0 %149, %v24
  %v151 = vpop.permute.xlu0 %150
  %154 = vset.pattern.permute.xlu0 0
  %155 = vperm.xlu0 %154, %v25
  %v156 = vpop.permute.xlu0 %155
  %v158 = vadd.f32 %v114, %v151
  %v159 = vadd.f32 %v116, %v151
  %v160 = vadd.f32 %v120, %v156
  %v161 = vadd.f32 %v122, %v156
  %163 = vset.pattern.permute.xlu0 0
  %164 = vperm.xlu0 %163, %v26
  %v165 = vpop.permute.xlu0 %164
  %168 = vset.pattern.permute.xlu0 0
  %169 = vperm.xlu0 %168, %v27
  %v170 = vpop.permute.xlu0 %169
  %v172 = vadd.f32 %v138, %v165
  %v173 = vadd.f32 %v140, %v165
  %v174 = vadd.f32 %v144, %v170
  %v175 = vadd.f32 %v146, %v170
  %176 = vxpose.xlu0.b32.start [1/16] %v126, 128
  %177 = vxpose.xlu0.b32.cont [2/16] %v132, 128
  %178 = vxpose.xlu0.b32.cont [3/16] 0.0, 128
  %179 = vxpose.xlu0.b32.cont [4/16] 0.0, 128
  %180 = vxpose.xlu0.b32.cont [5/16] 0.0, 128
  %181 = vxpose.xlu0.b32.cont [6/16] 0.0, 128
  %182 = vxpose.xlu0.b32.cont [7/16] 0.0, 128
  %183 = vxpose.xlu0.b32.cont [8/16] 0.0, 128
  %184 = vxpose.xlu0.b32.cont [9/16] 0.0, 128
  %185 = vxpose.xlu0.b32.cont [10/16] 0.0, 128
  %186 = vxpose.xlu0.b32.cont [11/16] 0.0, 128
  %187 = vxpose.xlu0.b32.cont [12/16] 0.0, 128
  %188 = vxpose.xlu0.b32.cont [13/16] 0.0, 128
  %189 = vxpose.xlu0.b32.cont [14/16] 0.0, 128
  %190 = vxpose.xlu0.b32.cont [15/16] 0.0, 128
  %191 = vxpose.xlu0.b32.end [16/16] 0.0, 128
  %v192 = vpop.trf.xlu0
  %v193 = vpop.trf.xlu0
  %v194 = vpop.trf.xlu0
  %v195 = vpop.trf.xlu0
  %v196 = vpop.trf.xlu0
  %v197 = vpop.trf.xlu0
  %v198 = vpop.trf.xlu0
  %v199 = vpop.trf.xlu0
  %v200 = vpop.trf.xlu0
  %v201 = vpop.trf.xlu0
  %v202 = vpop.trf.xlu0
  %v203 = vpop.trf.xlu0
  %v204 = vpop.trf.xlu0
  %v205 = vpop.trf.xlu0
  %v206 = vpop.trf.xlu0
  %v207 = vpop.trf.xlu0
  %v209 = vsel %vm28, %v192, 0
  %v212 = vsel %vm28, %v193, 0
  %v215 = vsel %vm28, %v194, 0
  %v218 = vsel %vm28, %v195, 0
  %v221 = vsel %vm28, %v196, 0
  %v224 = vsel %vm28, %v197, 0
  %v227 = vsel %vm28, %v198, 0
  %v230 = vsel %vm28, %v199, 0
  %v233 = vsel %vm28, %v200, 0
  %v236 = vsel %vm28, %v201, 0
  %v239 = vsel %vm28, %v202, 0
  %v242 = vsel %vm28, %v203, 0
  %v245 = vsel %vm28, %v204, 0
  %v248 = vsel %vm28, %v205, 0
  %v251 = vsel %vm28, %v206, 0
  %v254 = vsel %vm28, %v207, 0
  %256 = vmatprep.subr.mxu0 0.0
  %257 = vmatpush1.msra.mxu0 %v158
  %258 = vmatprep.subr.mxu0 0.0
  %259 = vmatpush1.msra.mxu0 %v160
  %260 = vmatprep.subr.mxu0 0.0
  %261 = vmatpush1.msra.mxu0 0.0
  %262 = vmatprep.subr.mxu0 0.0
  %263 = vmatpush1.msra.mxu0 0.0
  %264 = vmatprep.subr.mxu0 0.0
  %265 = vmatpush1.msra.mxu0 0.0
  %266 = vmatprep.subr.mxu0 0.0
  %267 = vmatpush1.msra.mxu0 0.0
  %268 = vmatprep.subr.mxu0 0.0
  %269 = vmatpush1.msra.mxu0 0.0
  %270 = vmatprep.subr.mxu0 0.0
  %271 = vmatpush1.msra.mxu0 0.0
  %272 = vmatprep.subr.mxu0 0.0
  %273 = vmatpush1.msra.mxu0 0.0
  %274 = vmatprep.subr.mxu0 0.0
  %275 = vmatpush1.msra.mxu0 0.0
  %276 = vmatprep.subr.mxu0 0.0
  %277 = vmatpush1.msra.mxu0 0.0
  %278 = vmatprep.subr.mxu0 0.0
  %279 = vmatpush1.msra.mxu0 0.0
  %280 = vmatprep.subr.mxu0 0.0
  %281 = vmatpush1.msra.mxu0 0.0
  %282 = vmatprep.subr.mxu0 0.0
  %283 = vmatpush1.msra.mxu0 0.0
  %284 = vmatprep.subr.mxu0 0.0
  %285 = vmatpush1.msra.mxu0 0.0
  %286 = vmatprep.subr.mxu0 0.0
  %287 = vmatpush1.msra.mxu0 0.0
  %288 = vmatprep.subr.mxu0 0.0
  %289 = vmatpush1.msra.mxu0 0.0
  %290 = vmatprep.subr.mxu0 0.0
  %291 = vmatpush1.msra.mxu0 0.0
  %292 = vmatprep.subr.mxu0 0.0
  %293 = vmatpush1.msra.mxu0 0.0
  %294 = vmatprep.subr.mxu0 0.0
  %295 = vmatpush1.msra.mxu0 0.0
  %296 = vmatprep.subr.mxu0 0.0
  %297 = vmatpush1.msra.mxu0 0.0
  %298 = vmatprep.subr.mxu0 0.0
  %299 = vmatpush1.msra.mxu0 0.0
  %300 = vmatprep.subr.mxu0 0.0
  %301 = vmatpush1.msra.mxu0 0.0
  %302 = vmatprep.subr.mxu0 0.0
  %303 = vmatpush1.msra.mxu0 0.0
  %304 = vmatprep.subr.mxu0 0.0
  %305 = vmatpush1.msra.mxu0 0.0
  %306 = vmatprep.subr.mxu0 0.0
  %307 = vmatpush1.msra.mxu0 0.0
  %308 = vmatprep.subr.mxu0 0.0
  %309 = vmatpush1.msra.mxu0 0.0
  %310 = vmatprep.subr.mxu0 0.0
  %311 = vmatpush1.msra.mxu0 0.0
  %312 = vmatprep.subr.mxu0 0.0
  %313 = vmatpush1.msra.mxu0 0.0
  %314 = vmatprep.subr.mxu0 0.0
  %315 = vmatpush1.msra.mxu0 0.0
  %316 = vmatprep.subr.mxu0 0.0
  %317 = vmatpush1.msra.mxu0 0.0
  %318 = vmatprep.subr.mxu0 0.0
  %319 = vmatpush1.msra.mxu0 0.0
  %320 = vmatprep.mubr.f32.mxu0 0.0
  %321 = vmatmul.mubr.f32.gmra.mrb[0].mxu0 %v209
  %v322 = vpop.f32.mrb[0].mxu0
  %v323 = vadd.f32 0.0, %v322
  %v324 = vpop.f32.mrb[0].mxu0
  %325 = vmatprep.mubr.f32.mxu0 0.0
  %326 = vmatmul.mubr.f32.gmra.mrb[0].mxu0 %v212
  %v327 = vpop.f32.mrb[0].mxu0
  %v328 = vadd.f32 0.0, %v327
  %v329 = vpop.f32.mrb[0].mxu0
  %330 = vmatprep.mubr.f32.mxu0 0.0
  %331 = vmatmul.mubr.f32.gmra.mrb[0].mxu0 %v215
  %v332 = vpop.f32.mrb[0].mxu0
  %v333 = vadd.f32 0.0, %v332
  %v334 = vpop.f32.mrb[0].mxu0
  %335 = vmatprep.mubr.f32.mxu0 0.0
  %336 = vmatmul.mubr.f32.gmra.mrb[0].mxu0 %v218
  %v337 = vpop.f32.mrb[0].mxu0
  %v338 = vadd.f32 0.0, %v337
  %v339 = vpop.f32.mrb[0].mxu0
  %340 = vmatprep.mubr.f32.mxu0 0.0
  %341 = vmatmul.mubr.f32.gmra.mrb[0].mxu0 %v221
  %v342 = vpop.f32.mrb[0].mxu0
  %v343 = vadd.f32 0.0, %v342
  %v344 = vpop.f32.mrb[0].mxu0
  %345 = vmatprep.mubr.f32.mxu0 0.0
  %346 = vmatmul.mubr.f32.gmra.mrb[0].mxu0 %v224
  %v347 = vpop.f32.mrb[0].mxu0
  %v348 = vadd.f32 0.0, %v347
  %v349 = vpop.f32.mrb[0].mxu0
  %350 = vmatprep.mubr.f32.mxu0 0.0
  %351 = vmatmul.mubr.f32.gmra.mrb[0].mxu0 %v227
  %v352 = vpop.f32.mrb[0].mxu0
  %v353 = vadd.f32 0.0, %v352
  %v354 = vpop.f32.mrb[0].mxu0
  %355 = vmatprep.mubr.f32.mxu0 0.0
  %356 = vmatmul.mubr.f32.gmra.mrb[0].mxu0 %v230
  %v357 = vpop.f32.mrb[0].mxu0
  %v358 = vadd.f32 0.0, %v357
  %v359 = vpop.f32.mrb[0].mxu0
  %360 = vmatprep.mubr.f32.mxu0 0.0
  %361 = vmatmul.mubr.f32.gmra.mrb[0].mxu0 %v233
  %v362 = vpop.f32.mrb[0].mxu0
  %v363 = vadd.f32 0.0, %v362
  %v364 = vpop.f32.mrb[0].mxu0
  %365 = vmatprep.mubr.f32.mxu0 0.0
  %366 = vmatmul.mubr.f32.gmra.mrb[0].mxu0 %v236
  %v367 = vpop.f32.mrb[0].mxu0
  %v368 = vadd.f32 0.0, %v367
  %v369 = vpop.f32.mrb[0].mxu0
  %370 = vmatprep.mubr.f32.mxu0 0.0
  %371 = vmatmul.mubr.f32.gmra.mrb[0].mxu0 %v239
  %v372 = vpop.f32.mrb[0].mxu0
  %v373 = vadd.f32 0.0, %v372
  %v374 = vpop.f32.mrb[0].mxu0
  %375 = vmatprep.mubr.f32.mxu0 0.0
  %376 = vmatmul.mubr.f32.gmra.mrb[0].mxu0 %v242
  %v377 = vpop.f32.mrb[0].mxu0
  %v378 = vadd.f32 0.0, %v377
  %v379 = vpop.f32.mrb[0].mxu0
  %380 = vmatprep.mubr.f32.mxu0 0.0
  %381 = vmatmul.mubr.f32.gmra.mrb[0].mxu0 %v245
  %v382 = vpop.f32.mrb[0].mxu0
  %v383 = vadd.f32 0.0, %v382
  %v384 = vpop.f32.mrb[0].mxu0
  %385 = vmatprep.mubr.f32.mxu0 0.0
  %386 = vmatmul.mubr.f32.gmra.mrb[0].mxu0 %v248
  %v387 = vpop.f32.mrb[0].mxu0
  %v388 = vadd.f32 0.0, %v387
  %v389 = vpop.f32.mrb[0].mxu0
  %390 = vmatprep.mubr.f32.mxu0 0.0
  %391 = vmatmul.mubr.f32.gmra.mrb[0].mxu0 %v251
  %v392 = vpop.f32.mrb[0].mxu0
  %v393 = vadd.f32 0.0, %v392
  %v394 = vpop.f32.mrb[0].mxu0
  %395 = vmatprep.mubr.f32.mxu0 0.0
  %396 = vmatmul.mubr.f32.gmra.mrb[0].mxu0 %v254
  %v397 = vpop.f32.mrb[0].mxu0
  %v398 = vadd.f32 0.0, %v397
  %v399 = vpop.f32.mrb[0].mxu0
  %400 = vdwg.mxu0
  %v401 = vmax.f32 %v323, %v343
  %v402 = vmax.f32 %v328, %v348
  %v403 = vmax.f32 %v333, %v353
  %v404 = vmax.f32 %v338, %v358
  %v405 = vmax.f32 %v401, %v363
  %v406 = vmax.f32 %v402, %v368
  %v407 = vmax.f32 %v403, %v373
  %v408 = vmax.f32 %v404, %v378
  %v409 = vmax.f32 %v405, %v383
  %v410 = vmax.f32 %v406, %v388
  %v411 = vmax.f32 %v407, %v393
  %v412 = vmax.f32 %v408, %v398
  %v413 = vmax.f32 %v409, %v410
  %v414 = vmax.f32 %v411, %v412
  %v415 = vmax.f32 %v413, %v414
  %v416 = vrot.slane %v415, 4
  %v417 = vmax.f32 %v415, %v416
  %v418 = vrot.slane %v417, 2
  %v419 = vmax.f32 %v417, %v418
  %v420 = vrot.slane %v419, 1
  %v421 = vmax.f32 %v419, %v420
  %v422 = vsub.f32 %v323, %v421
  %v423 = vsub.f32 %v328, %v421
  %v424 = vsub.f32 %v333, %v421
  %v425 = vsub.f32 %v338, %v421
  %v426 = vsub.f32 %v343, %v421
  %v427 = vsub.f32 %v348, %v421
  %v428 = vsub.f32 %v353, %v421
  %v429 = vsub.f32 %v358, %v421
  %v430 = vsub.f32 %v363, %v421
  %v431 = vsub.f32 %v368, %v421
  %v432 = vsub.f32 %v373, %v421
  %v433 = vsub.f32 %v378, %v421
  %v434 = vsub.f32 %v383, %v421
  %v435 = vsub.f32 %v388, %v421
  %v436 = vsub.f32 %v393, %v421
  %v437 = vsub.f32 %v398, %v421
  %v438 = vmul.f32 %v422, 1.442695
  %v439 = vpow.pop %v438
  %v440 = vmul.f32 %v423, 1.442695
  %v441 = vpow.pop %v440
  %v442 = vmul.f32 %v424, 1.442695
  %v443 = vpow.pop %v442
  %v444 = vmul.f32 %v425, 1.442695
  %v445 = vpow.pop %v444
  %v446 = vmul.f32 %v426, 1.442695
  %v447 = vpow.pop %v446
  %v448 = vmul.f32 %v427, 1.442695
  %v449 = vpow.pop %v448
  %v450 = vmul.f32 %v428, 1.442695
  %v451 = vpow.pop %v450
  %v452 = vmul.f32 %v429, 1.442695
  %v453 = vpow.pop %v452
  %v454 = vmul.f32 %v430, 1.442695
  %v455 = vpow.pop %v454
  %v456 = vmul.f32 %v431, 1.442695
  %v457 = vpow.pop %v456
  %v458 = vmul.f32 %v432, 1.442695
  %v459 = vpow.pop %v458
  %v460 = vmul.f32 %v433, 1.442695
  %v461 = vpow.pop %v460
  %v462 = vmul.f32 %v434, 1.442695
  %v463 = vpow.pop %v462
  %v464 = vmul.f32 %v435, 1.442695
  %v465 = vpow.pop %v464
  %v466 = vmul.f32 %v436, 1.442695
  %v467 = vpow.pop %v466
  %v468 = vmul.f32 %v437, 1.442695
  %v469 = vpow.pop %v468
  %v470 = vadd.f32 %v439, %v441
  %v471 = vadd.f32 %v470, %v443
  %v472 = vadd.f32 %v471, %v445
  %v473 = vadd.f32 %v472, %v447
  %v474 = vadd.f32 %v473, %v449
  %v475 = vadd.f32 %v474, %v451
  %v476 = vadd.f32 %v475, %v453
  %v477 = vadd.f32 %v476, %v455
  %v478 = vadd.f32 %v477, %v457
  %v479 = vadd.f32 %v478, %v459
  %v480 = vadd.f32 %v479, %v461
  %v481 = vadd.f32 %v480, %v463
  %v482 = vadd.f32 %v481, %v465
  %v483 = vadd.f32 %v482, %v467
  %v484 = vadd.f32 %v483, %v469
  %v485 = vrot.slane %v484, 4
  %v486 = vadd.f32 %v484, %v485
  %v487 = vrot.slane %v486, 2
  %v488 = vadd.f32 %v486, %v487
  %v489 = vrot.slane %v488, 1
  %v490 = vadd.f32 %v488, %v489
  %491 = vmatprep.subr.mxu0 0.0
  %492 = vmatpush1.msra.mxu0 %v439
  %493 = vmatprep.subr.mxu0 0.0
  %494 = vmatpush1.msra.mxu0 %v441
  %495 = vmatprep.subr.mxu0 0.0
  %496 = vmatpush1.msra.mxu0 %v443
  %497 = vmatprep.subr.mxu0 0.0
  %498 = vmatpush1.msra.mxu0 %v445
  %499 = vmatprep.subr.mxu0 0.0
  %500 = vmatpush1.msra.mxu0 %v447
  %501 = vmatprep.subr.mxu0 0.0
  %502 = vmatpush1.msra.mxu0 %v449
  %503 = vmatprep.subr.mxu0 0.0
  %504 = vmatpush1.msra.mxu0 %v451
  %505 = vmatprep.subr.mxu0 0.0
  %506 = vmatpush1.msra.mxu0 %v453
  %507 = vmatprep.subr.mxu0 0.0
  %508 = vmatpush1.msra.mxu0 %v455
  %509 = vmatprep.subr.mxu0 0.0
  %510 = vmatpush1.msra.mxu0 %v457
  %511 = vmatprep.subr.mxu0 0.0
  %512 = vmatpush1.msra.mxu0 %v459
  %513 = vmatprep.subr.mxu0 0.0
  %514 = vmatpush1.msra.mxu0 %v461
  %515 = vmatprep.subr.mxu0 0.0
  %516 = vmatpush1.msra.mxu0 %v463
  %517 = vmatprep.subr.mxu0 0.0
  %518 = vmatpush1.msra.mxu0 %v465
  %519 = vmatprep.subr.mxu0 0.0
  %520 = vmatpush1.msra.mxu0 %v467
  %521 = vmatprep.subr.mxu0 0.0
  %522 = vmatpush1.msra.mxu0 %v469
  %523 = vmatprep.subr.mxu0 0.0
  %524 = vmatpush1.msra.mxu0 0.0
  %525 = vmatprep.subr.mxu0 0.0
  %526 = vmatpush1.msra.mxu0 0.0
  %527 = vmatprep.subr.mxu0 0.0
  %528 = vmatpush1.msra.mxu0 0.0
  %529 = vmatprep.subr.mxu0 0.0
  %530 = vmatpush1.msra.mxu0 0.0
  %531 = vmatprep.subr.mxu0 0.0
  %532 = vmatpush1.msra.mxu0 0.0
  %533 = vmatprep.subr.mxu0 0.0
  %534 = vmatpush1.msra.mxu0 0.0
  %535 = vmatprep.subr.mxu0 0.0
  %536 = vmatpush1.msra.mxu0 0.0
  %537 = vmatprep.subr.mxu0 0.0
  %538 = vmatpush1.msra.mxu0 0.0
  %539 = vmatprep.subr.mxu0 0.0
  %540 = vmatpush1.msra.mxu0 0.0
  %541 = vmatprep.subr.mxu0 0.0
  %542 = vmatpush1.msra.mxu0 0.0
  %543 = vmatprep.subr.mxu0 0.0
  %544 = vmatpush1.msra.mxu0 0.0
  %545 = vmatprep.subr.mxu0 0.0
  %546 = vmatpush1.msra.mxu0 0.0
  %547 = vmatprep.subr.mxu0 0.0
  %548 = vmatpush1.msra.mxu0 0.0
  %549 = vmatprep.subr.mxu0 0.0
  %550 = vmatpush1.msra.mxu0 0.0
  %551 = vmatprep.subr.mxu0 0.0
  %552 = vmatpush1.msra.mxu0 0.0
  %553 = vmatprep.subr.mxu0 0.0
  %554 = vmatpush1.msra.mxu0 0.0
  %555 = vmatprep.mubr.f32.mxu0 0.0
  %556 = vmatmul.mubr.f32.gmra.mrb[0].mxu0 %v172
  %v557 = vpop.f32.mrb[0].mxu0
  %v558 = vadd.f32 0.0, %v557
  %v559 = vpop.f32.mrb[0].mxu0
  %560 = vmatprep.mubr.f32.mxu0 0.0
  %561 = vmatmul.mubr.f32.gmra.mrb[0].mxu0 %v174
  %v562 = vpop.f32.mrb[0].mxu0
  %v563 = vadd.f32 0.0, %v562
  %v564 = vpop.f32.mrb[0].mxu0
  %565 = vdwg.mxu0
  %v566 = vrcp.pop %v490
  %v567 = vmul.f32 %v558, %v566
  %v568 = vmul.f32 %v563, %v566
  %569 = vst [vmem:[%s3] sm:$0xff] %v567
  %570 = vst [vmem:[%s3 + $0x10] sm:$0xff] %v568
  %571 = vxpose.xlu0.b32.start [1/16] %v128, 128
  %572 = vxpose.xlu0.b32.cont [2/16] %v134, 128
  %573 = vxpose.xlu0.b32.cont [3/16] 0.0, 128
  %574 = vxpose.xlu0.b32.cont [4/16] 0.0, 128
  %575 = vxpose.xlu0.b32.cont [5/16] 0.0, 128
  %576 = vxpose.xlu0.b32.cont [6/16] 0.0, 128
  %577 = vxpose.xlu0.b32.cont [7/16] 0.0, 128
  %578 = vxpose.xlu0.b32.cont [8/16] 0.0, 128
  %579 = vxpose.xlu0.b32.cont [9/16] 0.0, 128
  %580 = vxpose.xlu0.b32.cont [10/16] 0.0, 128
  %581 = vxpose.xlu0.b32.cont [11/16] 0.0, 128
  %582 = vxpose.xlu0.b32.cont [12/16] 0.0, 128
  %583 = vxpose.xlu0.b32.cont [13/16] 0.0, 128
  %584 = vxpose.xlu0.b32.cont [14/16] 0.0, 128
  %585 = vxpose.xlu0.b32.cont [15/16] 0.0, 128
  %586 = vxpose.xlu0.b32.end [16/16] 0.0, 128
  %v587 = vpop.trf.xlu0
  %v588 = vpop.trf.xlu0
  %v589 = vpop.trf.xlu0
  %v590 = vpop.trf.xlu0
  %v591 = vpop.trf.xlu0
  %v592 = vpop.trf.xlu0
  %v593 = vpop.trf.xlu0
  %v594 = vpop.trf.xlu0
  %v595 = vpop.trf.xlu0
  %v596 = vpop.trf.xlu0
  %v597 = vpop.trf.xlu0
  %v598 = vpop.trf.xlu0
  %v599 = vpop.trf.xlu0
  %v600 = vpop.trf.xlu0
  %v601 = vpop.trf.xlu0
  %v602 = vpop.trf.xlu0
  %v604 = vsel %vm28, %v587, 0
  %v607 = vsel %vm28, %v588, 0
  %v610 = vsel %vm28, %v589, 0
  %v613 = vsel %vm28, %v590, 0
  %v616 = vsel %vm28, %v591, 0
  %v619 = vsel %vm28, %v592, 0
  %v622 = vsel %vm28, %v593, 0
  %v625 = vsel %vm28, %v594, 0
  %v628 = vsel %vm28, %v595, 0
  %v631 = vsel %vm28, %v596, 0
  %v634 = vsel %vm28, %v597, 0
  %v637 = vsel %vm28, %v598, 0
  %v640 = vsel %vm28, %v599, 0
  %v643 = vsel %vm28, %v600, 0
  %v646 = vsel %vm28, %v601, 0
  %v649 = vsel %vm28, %v602, 0
  %651 = vmatprep.subr.mxu0 0.0
  %652 = vmatpush1.msra.mxu0 %v159
  %653 = vmatprep.subr.mxu0 0.0
  %654 = vmatpush1.msra.mxu0 %v161
  %655 = vmatprep.subr.mxu0 0.0
  %656 = vmatpush1.msra.mxu0 0.0
  %657 = vmatprep.subr.mxu0 0.0
  %658 = vmatpush1.msra.mxu0 0.0
  %659 = vmatprep.subr.mxu0 0.0
  %660 = vmatpush1.msra.mxu0 0.0
  %661 = vmatprep.subr.mxu0 0.0
  %662 = vmatpush1.msra.mxu0 0.0
  %663 = vmatprep.subr.mxu0 0.0
  %664 = vmatpush1.msra.mxu0 0.0
  %665 = vmatprep.subr.mxu0 0.0
  %666 = vmatpush1.msra.mxu0 0.0
  %667 = vmatprep.subr.mxu0 0.0
  %668 = vmatpush1.msra.mxu0 0.0
  %669 = vmatprep.subr.mxu0 0.0
  %670 = vmatpush1.msra.mxu0 0.0
  %671 = vmatprep.subr.mxu0 0.0
  %672 = vmatpush1.msra.mxu0 0.0
  %673 = vmatprep.subr.mxu0 0.0
  %674 = vmatpush1.msra.mxu0 0.0
  %675 = vmatprep.subr.mxu0 0.0
  %676 = vmatpush1.msra.mxu0 0.0
  %677 = vmatprep.subr.mxu0 0.0
  %678 = vmatpush1.msra.mxu0 0.0
  %679 = vmatprep.subr.mxu0 0.0
  %680 = vmatpush1.msra.mxu0 0.0
  %681 = vmatprep.subr.mxu0 0.0
  %682 = vmatpush1.msra.mxu0 0.0
  %683 = vmatprep.subr.mxu0 0.0
  %684 = vmatpush1.msra.mxu0 0.0
  %685 = vmatprep.subr.mxu0 0.0
  %686 = vmatpush1.msra.mxu0 0.0
  %687 = vmatprep.subr.mxu0 0.0
  %688 = vmatpush1.msra.mxu0 0.0
  %689 = vmatprep.subr.mxu0 0.0
  %690 = vmatpush1.msra.mxu0 0.0
  %691 = vmatprep.subr.mxu0 0.0
  %692 = vmatpush1.msra.mxu0 0.0
  %693 = vmatprep.subr.mxu0 0.0
  %694 = vmatpush1.msra.mxu0 0.0
  %695 = vmatprep.subr.mxu0 0.0
  %696 = vmatpush1.msra.mxu0 0.0
  %697 = vmatprep.subr.mxu0 0.0
  %698 = vmatpush1.msra.mxu0 0.0
  %699 = vmatprep.subr.mxu0 0.0
  %700 = vmatpush1.msra.mxu0 0.0
  %701 = vmatprep.subr.mxu0 0.0
  %702 = vmatpush1.msra.mxu0 0.0
  %703 = vmatprep.subr.mxu0 0.0
  %704 = vmatpush1.msra.mxu0 0.0
  %705 = vmatprep.subr.mxu0 0.0
  %706 = vmatpush1.msra.mxu0 0.0
  %707 = vmatprep.subr.mxu0 0.0
  %708 = vmatpush1.msra.mxu0 0.0
  %709 = vmatprep.subr.mxu0 0.0
  %710 = vmatpush1.msra.mxu0 0.0
  %711 = vmatprep.subr.mxu0 0.0
  %712 = vmatpush1.msra.mxu0 0.0
  %713 = vmatprep.subr.mxu0 0.0
  %714 = vmatpush1.msra.mxu0 0.0
  %715 = vmatprep.mubr.f32.mxu0 0.0
  %716 = vmatmul.mubr.f32.gmra.mrb[0].mxu0 %v604
  %v717 = vpop.f32.mrb[0].mxu0
  %v718 = vadd.f32 0.0, %v717
  %v719 = vpop.f32.mrb[0].mxu0
  %720 = vmatprep.mubr.f32.mxu0 0.0
  %721 = vmatmul.mubr.f32.gmra.mrb[0].mxu0 %v607
  %v722 = vpop.f32.mrb[0].mxu0
  %v723 = vadd.f32 0.0, %v722
  %v724 = vpop.f32.mrb[0].mxu0
  %725 = vmatprep.mubr.f32.mxu0 0.0
  %726 = vmatmul.mubr.f32.gmra.mrb[0].mxu0 %v610
  %v727 = vpop.f32.mrb[0].mxu0
  %v728 = vadd.f32 0.0, %v727
  %v729 = vpop.f32.mrb[0].mxu0
  %730 = vmatprep.mubr.f32.mxu0 0.0
  %731 = vmatmul.mubr.f32.gmra.mrb[0].mxu0 %v613
  %v732 = vpop.f32.mrb[0].mxu0
  %v733 = vadd.f32 0.0, %v732
  %v734 = vpop.f32.mrb[0].mxu0
  %735 = vmatprep.mubr.f32.mxu0 0.0
  %736 = vmatmul.mubr.f32.gmra.mrb[0].mxu0 %v616
  %v737 = vpop.f32.mrb[0].mxu0
  %v738 = vadd.f32 0.0, %v737
  %v739 = vpop.f32.mrb[0].mxu0
  %740 = vmatprep.mubr.f32.mxu0 0.0
  %741 = vmatmul.mubr.f32.gmra.mrb[0].mxu0 %v619
  %v742 = vpop.f32.mrb[0].mxu0
  %v743 = vadd.f32 0.0, %v742
  %v744 = vpop.f32.mrb[0].mxu0
  %745 = vmatprep.mubr.f32.mxu0 0.0
  %746 = vmatmul.mubr.f32.gmra.mrb[0].mxu0 %v622
  %v747 = vpop.f32.mrb[0].mxu0
  %v748 = vadd.f32 0.0, %v747
  %v749 = vpop.f32.mrb[0].mxu0
  %750 = vmatprep.mubr.f32.mxu0 0.0
  %751 = vmatmul.mubr.f32.gmra.mrb[0].mxu0 %v625
  %v752 = vpop.f32.mrb[0].mxu0
  %v753 = vadd.f32 0.0, %v752
  %v754 = vpop.f32.mrb[0].mxu0
  %755 = vmatprep.mubr.f32.mxu0 0.0
  %756 = vmatmul.mubr.f32.gmra.mrb[0].mxu0 %v628
  %v757 = vpop.f32.mrb[0].mxu0
  %v758 = vadd.f32 0.0, %v757
  %v759 = vpop.f32.mrb[0].mxu0
  %760 = vmatprep.mubr.f32.mxu0 0.0
  %761 = vmatmul.mubr.f32.gmra.mrb[0].mxu0 %v631
  %v762 = vpop.f32.mrb[0].mxu0
  %v763 = vadd.f32 0.0, %v762
  %v764 = vpop.f32.mrb[0].mxu0
  %765 = vmatprep.mubr.f32.mxu0 0.0
  %766 = vmatmul.mubr.f32.gmra.mrb[0].mxu0 %v634
  %v767 = vpop.f32.mrb[0].mxu0
  %v768 = vadd.f32 0.0, %v767
  %v769 = vpop.f32.mrb[0].mxu0
  %770 = vmatprep.mubr.f32.mxu0 0.0
  %771 = vmatmul.mubr.f32.gmra.mrb[0].mxu0 %v637
  %v772 = vpop.f32.mrb[0].mxu0
  %v773 = vadd.f32 0.0, %v772
  %v774 = vpop.f32.mrb[0].mxu0
  %775 = vmatprep.mubr.f32.mxu0 0.0
  %776 = vmatmul.mubr.f32.gmra.mrb[0].mxu0 %v640
  %v777 = vpop.f32.mrb[0].mxu0
  %v778 = vadd.f32 0.0, %v777
  %v779 = vpop.f32.mrb[0].mxu0
  %780 = vmatprep.mubr.f32.mxu0 0.0
  %781 = vmatmul.mubr.f32.gmra.mrb[0].mxu0 %v643
  %v782 = vpop.f32.mrb[0].mxu0
  %v783 = vadd.f32 0.0, %v782
  %v784 = vpop.f32.mrb[0].mxu0
  %785 = vmatprep.mubr.f32.mxu0 0.0
  %786 = vmatmul.mubr.f32.gmra.mrb[0].mxu0 %v646
  %v787 = vpop.f32.mrb[0].mxu0
  %v788 = vadd.f32 0.0, %v787
  %v789 = vpop.f32.mrb[0].mxu0
  %790 = vmatprep.mubr.f32.mxu0 0.0
  %791 = vmatmul.mubr.f32.gmra.mrb[0].mxu0 %v649
  %v792 = vpop.f32.mrb[0].mxu0
  %v793 = vadd.f32 0.0, %v792
  %v794 = vpop.f32.mrb[0].mxu0
  %795 = vdwg.mxu0
  %v796 = vmax.f32 %v718, %v738
  %v797 = vmax.f32 %v723, %v743
  %v798 = vmax.f32 %v728, %v748
  %v799 = vmax.f32 %v733, %v753
  %v800 = vmax.f32 %v796, %v758
  %v801 = vmax.f32 %v797, %v763
  %v802 = vmax.f32 %v798, %v768
  %v803 = vmax.f32 %v799, %v773
  %v804 = vmax.f32 %v800, %v778
  %v805 = vmax.f32 %v801, %v783
  %v806 = vmax.f32 %v802, %v788
  %v807 = vmax.f32 %v803, %v793
  %v808 = vmax.f32 %v804, %v805
  %v809 = vmax.f32 %v806, %v807
  %v810 = vmax.f32 %v808, %v809
  %v811 = vrot.slane %v810, 4
  %v812 = vmax.f32 %v810, %v811
  %v813 = vrot.slane %v812, 2
  %v814 = vmax.f32 %v812, %v813
  %v815 = vrot.slane %v814, 1
  %v816 = vmax.f32 %v814, %v815
  %v817 = vsub.f32 %v718, %v816
  %v818 = vsub.f32 %v723, %v816
  %v819 = vsub.f32 %v728, %v816
  %v820 = vsub.f32 %v733, %v816
  %v821 = vsub.f32 %v738, %v816
  %v822 = vsub.f32 %v743, %v816
  %v823 = vsub.f32 %v748, %v816
  %v824 = vsub.f32 %v753, %v816
  %v825 = vsub.f32 %v758, %v816
  %v826 = vsub.f32 %v763, %v816
  %v827 = vsub.f32 %v768, %v816
  %v828 = vsub.f32 %v773, %v816
  %v829 = vsub.f32 %v778, %v816
  %v830 = vsub.f32 %v783, %v816
  %v831 = vsub.f32 %v788, %v816
  %v832 = vsub.f32 %v793, %v816
  %v833 = vmul.f32 %v817, 1.442695
  %v834 = vpow.pop %v833
  %v835 = vmul.f32 %v818, 1.442695
  %v836 = vpow.pop %v835
  %v837 = vmul.f32 %v819, 1.442695
  %v838 = vpow.pop %v837
  %v839 = vmul.f32 %v820, 1.442695
  %v840 = vpow.pop %v839
  %v841 = vmul.f32 %v821, 1.442695
  %v842 = vpow.pop %v841
  %v843 = vmul.f32 %v822, 1.442695
  %v844 = vpow.pop %v843
  %v845 = vmul.f32 %v823, 1.442695
  %v846 = vpow.pop %v845
  %v847 = vmul.f32 %v824, 1.442695
  %v848 = vpow.pop %v847
  %v849 = vmul.f32 %v825, 1.442695
  %v850 = vpow.pop %v849
  %v851 = vmul.f32 %v826, 1.442695
  %v852 = vpow.pop %v851
  %v853 = vmul.f32 %v827, 1.442695
  %v854 = vpow.pop %v853
  %v855 = vmul.f32 %v828, 1.442695
  %v856 = vpow.pop %v855
  %v857 = vmul.f32 %v829, 1.442695
  %v858 = vpow.pop %v857
  %v859 = vmul.f32 %v830, 1.442695
  %v860 = vpow.pop %v859
  %v861 = vmul.f32 %v831, 1.442695
  %v862 = vpow.pop %v861
  %v863 = vmul.f32 %v832, 1.442695
  %v864 = vpow.pop %v863
  %v865 = vadd.f32 %v834, %v836
  %v866 = vadd.f32 %v865, %v838
  %v867 = vadd.f32 %v866, %v840
  %v868 = vadd.f32 %v867, %v842
  %v869 = vadd.f32 %v868, %v844
  %v870 = vadd.f32 %v869, %v846
  %v871 = vadd.f32 %v870, %v848
  %v872 = vadd.f32 %v871, %v850
  %v873 = vadd.f32 %v872, %v852
  %v874 = vadd.f32 %v873, %v854
  %v875 = vadd.f32 %v874, %v856
  %v876 = vadd.f32 %v875, %v858
  %v877 = vadd.f32 %v876, %v860
  %v878 = vadd.f32 %v877, %v862
  %v879 = vadd.f32 %v878, %v864
  %v880 = vrot.slane %v879, 4
  %v881 = vadd.f32 %v879, %v880
  %v882 = vrot.slane %v881, 2
  %v883 = vadd.f32 %v881, %v882
  %v884 = vrot.slane %v883, 1
  %v885 = vadd.f32 %v883, %v884
  %886 = vmatprep.subr.mxu0 0.0
  %887 = vmatpush1.msra.mxu0 %v834
  %888 = vmatprep.subr.mxu0 0.0
  %889 = vmatpush1.msra.mxu0 %v836
  %890 = vmatprep.subr.mxu0 0.0
  %891 = vmatpush1.msra.mxu0 %v838
  %892 = vmatprep.subr.mxu0 0.0
  %893 = vmatpush1.msra.mxu0 %v840
  %894 = vmatprep.subr.mxu0 0.0
  %895 = vmatpush1.msra.mxu0 %v842
  %896 = vmatprep.subr.mxu0 0.0
  %897 = vmatpush1.msra.mxu0 %v844
  %898 = vmatprep.subr.mxu0 0.0
  %899 = vmatpush1.msra.mxu0 %v846
  %900 = vmatprep.subr.mxu0 0.0
  %901 = vmatpush1.msra.mxu0 %v848
  %902 = vmatprep.subr.mxu0 0.0
  %903 = vmatpush1.msra.mxu0 %v850
  %904 = vmatprep.subr.mxu0 0.0
  %905 = vmatpush1.msra.mxu0 %v852
  %906 = vmatprep.subr.mxu0 0.0
  %907 = vmatpush1.msra.mxu0 %v854
  %908 = vmatprep.subr.mxu0 0.0
  %909 = vmatpush1.msra.mxu0 %v856
  %910 = vmatprep.subr.mxu0 0.0
  %911 = vmatpush1.msra.mxu0 %v858
  %912 = vmatprep.subr.mxu0 0.0
  %913 = vmatpush1.msra.mxu0 %v860
  %914 = vmatprep.subr.mxu0 0.0
  %915 = vmatpush1.msra.mxu0 %v862
  %916 = vmatprep.subr.mxu0 0.0
  %917 = vmatpush1.msra.mxu0 %v864
  %918 = vmatprep.subr.mxu0 0.0
  %919 = vmatpush1.msra.mxu0 0.0
  %920 = vmatprep.subr.mxu0 0.0
  %921 = vmatpush1.msra.mxu0 0.0
  %922 = vmatprep.subr.mxu0 0.0
  %923 = vmatpush1.msra.mxu0 0.0
  %924 = vmatprep.subr.mxu0 0.0
  %925 = vmatpush1.msra.mxu0 0.0
  %926 = vmatprep.subr.mxu0 0.0
  %927 = vmatpush1.msra.mxu0 0.0
  %928 = vmatprep.subr.mxu0 0.0
  %929 = vmatpush1.msra.mxu0 0.0
  %930 = vmatprep.subr.mxu0 0.0
  %931 = vmatpush1.msra.mxu0 0.0
  %932 = vmatprep.subr.mxu0 0.0
  %933 = vmatpush1.msra.mxu0 0.0
  %934 = vmatprep.subr.mxu0 0.0
  %935 = vmatpush1.msra.mxu0 0.0
  %936 = vmatprep.subr.mxu0 0.0
  %937 = vmatpush1.msra.mxu0 0.0
  %938 = vmatprep.subr.mxu0 0.0
  %939 = vmatpush1.msra.mxu0 0.0
  %940 = vmatprep.subr.mxu0 0.0
  %941 = vmatpush1.msra.mxu0 0.0
  %942 = vmatprep.subr.mxu0 0.0
  %943 = vmatpush1.msra.mxu0 0.0
  %944 = vmatprep.subr.mxu0 0.0
  %945 = vmatpush1.msra.mxu0 0.0
  %946 = vmatprep.subr.mxu0 0.0
  %947 = vmatpush1.msra.mxu0 0.0
  %948 = vmatprep.subr.mxu0 0.0
  %949 = vmatpush1.msra.mxu0 0.0
  %950 = vmatprep.mubr.f32.mxu0 0.0
  %951 = vmatmul.mubr.f32.gmra.mrb[0].mxu0 %v173
  %v952 = vpop.f32.mrb[0].mxu0
  %v953 = vadd.f32 0.0, %v952
  %v954 = vpop.f32.mrb[0].mxu0
  %955 = vmatprep.mubr.f32.mxu0 0.0
  %956 = vmatmul.mubr.f32.gmra.mrb[0].mxu0 %v175
  %v957 = vpop.f32.mrb[0].mxu0
  %v958 = vadd.f32 0.0, %v957
  %v959 = vpop.f32.mrb[0].mxu0
  %960 = vdwg.mxu0
  %v961 = vrcp.pop %v885
  %v962 = vmul.f32 %v953, %v961
  %v963 = vmul.f32 %v958, %v961
  %964 = vst [vmem:[%s3 + $0x8] sm:$0xff] %v962
  %965 = vst [vmem:[%s3 + $0x18] sm:$0xff] %v963
  // Predicated region
  $region14: #{attention_layer_pallas.1} parent=0 // pred_check
    _
  $region15: #{attention_layer_pallas.1} parent=0 // pred_check_branch
    %967 = sbr.rel (0) target = $region17
  $region16: #{attention_layer_pallas.1} parent=0 // pred_region
    _
  $region17: #{attention_layer_pallas.1} parent=0 // pred_fallthru
    _
  // Predicated region
  $region18: #{attention_layer_pallas.1} parent=0 // pred_check
    _
  $region19: #{attention_layer_pallas.1} parent=0 // pred_check_branch
    %969 = sbr.rel (0) target = $region21
  $region20: #{attention_layer_pallas.1} parent=0 // pred_region
    _
  $region21: #{attention_layer_pallas.1} parent=0 // pred_fallthru
    _

</llo_original>
